<compile_context>
chip_gen: v6e
topology: v6e:2x2x1
jax: 0.10.0
libtpu: 0.0.40
codegen_flags: <defaults>
</compile_context>

<pallas_src>
import functools

import jax
import jax.numpy as jnp
from jax.experimental import pallas as pl
from jax.experimental.pallas import tpu as pltpu


LANE = 128
# Per x/out block budget. Double-buffered x + out + enc stays ~10 MiB, which
# fits every generation's default scoped VMEM (v5e 16 MiB, v6e/v7x 32 MiB).
_TARGET_BLOCK_BYTES = 2 * 1024 * 1024


# ----------------------------- kernels --------------------------------------


def _pe_add_kernel(x_ref, enc_ref, o_ref):
    # Eval-mode path: dropout is identity -> lane-dense broadcast add.
    # x_ref: (B, tile_c), enc_ref: (1, tile_c) broadcast over batch.
    o_ref[...] = x_ref[...] + enc_ref[...]


def _pe_add_dropout_kernel(seed_ref, x_ref, enc_ref, o_ref, *,
                           threshold, inv_keep, c_pad):
    # Training-mode path: add encoding, then inverted dropout.
    y = x_ref[...] + enc_ref[...]                      # (B, tile_c)

    # Counter-based per-element PRNG (lowbias32 mixer) keyed on
    # (seed, global element index).  Pure VPU integer work (free under the
    # HBM-bound add), no stateful hardware PRNG, no cross-block state.
    tile_c = y.shape[-1]
    col0 = (pl.program_id(0) * tile_c).astype(jnp.uint32)
    rows = jax.lax.broadcasted_iota(jnp.uint32, y.shape, 0)
    cols = jax.lax.broadcasted_iota(jnp.uint32, y.shape, 1)
    idx = rows * jnp.uint32(c_pad) + cols + col0       # global linear index

    seed = seed_ref[0].astype(jnp.uint32)
    h = idx * jnp.uint32(0x9E3779B1) + seed * jnp.uint32(0x85EBCA77)
    h = h ^ (h >> 16)
    h = h * jnp.uint32(0x7FEB352D)
    h = h ^ (h >> 15)
    h = h * jnp.uint32(0x846CA68B)
    h = h ^ (h >> 16)

    # P(keep) = keep_prob (floor bias <= 2**-32 -- intentional, do not "fix").
    keep = h < jnp.uint32(threshold)
    scale = jnp.asarray(inv_keep, dtype=y.dtype)
    o_ref[...] = jnp.where(keep, y * scale, jnp.zeros_like(y))


# ----------------------------- wrapper ---------------------------------------


def positional_encoding_forward(x, encoding, *, dropout_p=0.1, training=False,
                                seed=0):
    """x: (B, S, E); encoding: (1, L, E) with L >= S. Returns (B, S, E)."""
    B, S, E = x.shape
    enc = encoding[:, :S, :].astype(x.dtype)           # PyTorch slice [:, :S, :]

    # Lane-dense layout: flatten (S, E) -> S*E so the trailing block dim is a
    # multiple of 128 (unmasked full-width stores instead of E-wide masked
    # stores), and tile only that flattened axis with large blocks.
    C = S * E
    x2 = x.reshape(B, C)
    enc2 = enc.reshape(1, C)

    itemsize = jnp.dtype(x.dtype).itemsize
    max_cols = max(LANE, (_TARGET_BLOCK_BYTES // (itemsize * B)) // LANE * LANE)
    tile_c = min(max_cols, pl.cdiv(C, LANE) * LANE)
    c_pad = pl.cdiv(C, tile_c) * tile_c
    if c_pad != C:
        x2 = jnp.pad(x2, ((0, 0), (0, c_pad - C)))
        enc2 = jnp.pad(enc2, ((0, 0), (0, c_pad - C)))
    grid = (c_pad // tile_c,)

    if (not training) or dropout_p <= 0.0:
        out2 = pl.pallas_call(
            _pe_add_kernel,
            out_shape=jax.ShapeDtypeStruct((B, c_pad), x.dtype),
            grid_spec=pltpu.PrefetchScalarGridSpec(
                num_scalar_prefetch=0,
                grid=grid,
                in_specs=[
                    pl.BlockSpec((B, tile_c), lambda j: (0, j)),
                    pl.BlockSpec((1, tile_c), lambda j: (0, j)),
                ],
                out_specs=pl.BlockSpec((B, tile_c), lambda j: (0, j)),
            ),
            compiler_params=pltpu.CompilerParams(
                dimension_semantics=("parallel",)),
        )(x2, enc2)
        return out2[:, :C].reshape(B, S, E)

    keep_prob = 1.0 - float(dropout_p)
    if keep_prob <= 0.0:
        return jnp.zeros_like(x)                       # p >= 1: drop everything

    # Clamp: keep_prob very close to 1 must not overflow uint32.
    threshold = min(int(round(keep_prob * (2 ** 32))), 2 ** 32 - 1)
    kernel = functools.partial(
        _pe_add_dropout_kernel,
        threshold=threshold, inv_keep=1.0 / keep_prob, c_pad=c_pad)
    seed_arr = jnp.asarray([seed], dtype=jnp.int32)

    out2 = pl.pallas_call(
        kernel,
        out_shape=jax.ShapeDtypeStruct((B, c_pad), x.dtype),
        grid_spec=pltpu.PrefetchScalarGridSpec(
            num_scalar_prefetch=1,                     # seed -> SMEM
            grid=grid,
            in_specs=[
                pl.BlockSpec((B, tile_c), lambda j, seed: (0, j)),
                pl.BlockSpec((1, tile_c), lambda j, seed: (0, j)),
            ],
            out_specs=pl.BlockSpec((B, tile_c), lambda j, seed: (0, j)),
        ),
        # Blocks are fully independent (stateless hash PRNG) -> safe to shard
        # across v7x's two TensorCores.
        compiler_params=pltpu.CompilerParams(
            dimension_semantics=("parallel",)),
    )(seed_arr, x2, enc2)
    return out2[:, :C].reshape(B, S, E)


# ----------------------------- main ------------------------------------------


if __name__ == "__main__":
    # Module config: embedding=32, length=100, dropout=0.1
    embedding = 32
    length = 100
    dropout_p = 0.1

    B, S = 2, 8   # small sequence length (S <= length)

    key = jax.random.PRNGKey(0)
    k_enc, k_x = jax.random.split(key)

    # Deterministic parameter init (analog of torch.randn(1, length, embedding)).
    encoding = jax.random.normal(k_enc, (1, length, embedding), dtype=jnp.float32)
    x = jax.random.normal(k_x, (B, S, embedding), dtype=jnp.float32)

    # Eval-mode run (dropout = identity) -> verifiable against pure JAX reference.
    out_eval = jax.block_until_ready(
        positional_encoding_forward(x, encoding, dropout_p=dropout_p,
                                    training=False))
    ref = x + encoding[:, :S, :]
    assert out_eval.shape == (B, S, embedding)
    assert jnp.allclose(out_eval, ref, atol=1e-6), "eval-mode mismatch"

    # Training-mode run (stochastic inverted dropout).
    out_train = jax.block_until_ready(
        positional_encoding_forward(x, encoding, dropout_p=dropout_p,
                                    training=True, seed=1234))
    assert out_train.shape == (B, S, embedding)
    # Dropout invariant: every output element is either 0 or ref / keep_prob.
    scaled_ref = ref / (1.0 - dropout_p)
    is_zero = jnp.isclose(out_train, 0.0)
    is_scaled = jnp.isclose(out_train, scaled_ref, atol=1e-5)
    assert bool(jnp.all(is_zero | is_scaled)), "training-mode dropout mismatch"
    # Dropout actually fires (and does not zero everything).
    n_zero = int(jnp.sum(is_zero))
    assert 0 < n_zero < B * S * embedding, "dropout mask degenerate"

    print("KERNEL_OK")
</pallas_src>

<mosaic_0001>
module attributes {stable_mosaic.version = 11 : i64} {
  func.func @_pe_add_kernel(%arg0: i32, %arg1: memref<2x256xf32, #tpu.memory_space<vmem>>, %arg2: memref<1x256xf32, #tpu.memory_space<vmem>>, %arg3: memref<2x256xf32, #tpu.memory_space<vmem>>) attributes {dimension_semantics = [#tpu.dimension_semantics<parallel>], iteration_bounds = array<i64: 1>, scalar_prefetch = 0 : i64, scratch_operands = 0 : i64, tpu.core_type = #tpu.core_type<tc>, window_params = [{transform_indices = @transform_0, window_bounds = array<i64: 2, 256>}, {transform_indices = @transform_1, window_bounds = array<i64: 1, 256>}, {transform_indices = @transform_2, window_bounds = array<i64: 2, 256>}]} {
    %c0 = arith.constant 0 : index
    %c0_0 = arith.constant 0 : index
    %0 = vector.load %arg1[%c0, %c0_0] : memref<2x256xf32, #tpu.memory_space<vmem>>, vector<2x256xf32>
    %c0_1 = arith.constant 0 : index
    %c0_2 = arith.constant 0 : index
    %1 = vector.load %arg2[%c0_1, %c0_2] : memref<1x256xf32, #tpu.memory_space<vmem>>, vector<1x256xf32>
    %2 = vector.broadcast %1 : vector<1x256xf32> to vector<2x256xf32>
    %3 = arith.addf %0, %2 : vector<2x256xf32>
    %c0_3 = arith.constant 0 : index
    %c0_4 = arith.constant 0 : index
    %4 = vector.load %arg3[%c0_3, %c0_4] : memref<2x256xf32, #tpu.memory_space<vmem>>, vector<2x256xf32>
    tpu.vector_store %arg3[%c0_3, %c0_4], %3 {strides = array<i32>} : memref<2x256xf32, #tpu.memory_space<vmem>>, vector<2x256xf32>,
    return
  }
  func.func @transform_0(%arg0: i32) -> (i32, i32) {
    %c0_i32 = arith.constant 0 : i32
    %c0_i32_0 = arith.constant 0 : i32
    return %c0_i32, %arg0 : i32, i32
  }
  func.func @transform_1(%arg0: i32) -> (i32, i32) {
    %c0_i32 = arith.constant 0 : i32
    %c0_i32_0 = arith.constant 0 : i32
    return %c0_i32, %arg0 : i32, i32
  }
  func.func @transform_2(%arg0: i32) -> (i32, i32) {
    %c0_i32 = arith.constant 0 : i32
    %c0_i32_0 = arith.constant 0 : i32
    return %c0_i32, %arg0 : i32, i32
  }
}

</mosaic_0001>

<llo_original>
// kernel: tpu_custom_call.1
$region0: #{tpu_custom_call.1}
  #allocation0 [shape = 'u32[]', space=smem, size = 0x4, offset = 0x4, fixed_abs, tag = 'smem constant byte address 0x4 - core index']
  #allocation1 [shape = 'u32[144,128]{1,0:T(1,128)}', space=vmem, size = 0x12000, scoped, tag = 'internal scratch']
  %s0 = inlined_call_operand.hbm [shape: f32[2,256], index: 0, kind: input, shape index: {}]
  %s1 = inlined_call_operand.hbm [shape: f32[1,256], index: 1, kind: input, shape index: {}]
  %s2 = inlined_call_operand.hbm [shape: f32[2,256], index: 2, kind: output, shape index: {}]
  %s3 = sld [smem:[#allocation0]]
  $region26: #{tpu_custom_call.1} parent=0
    _
  %s5 = ssub.s32 1, %s3
  %s6 = scalar_select 0, %s5, %s3
  $region1: #{tpu_custom_call.1} parent=0
    #allocation2 [shape = 'u8[2048]{0}', space=vmem, size = 0x800, scoped, tag = 'input window, operand 0, single buffered']
    #allocation3 [shape = 's32[1]{0}', space=sflag, size = 0x4, scoped, tag = 'scoped memory for tpu_custom_call.1']
    #allocation4 [shape = 's32[1]{0}', space=sflag, size = 0x4, scoped, tag = 'scoped memory for tpu_custom_call.1']
    #allocation5 [shape = 'u8[1024]{0}', space=vmem, size = 0x400, scoped, tag = 'input window, operand 1, single buffered']
    #allocation6 [shape = 's32[1]{0}', space=sflag, size = 0x4, scoped, tag = 'scoped memory for tpu_custom_call.1']
    #allocation7 [shape = 'u8[2048]{0}', space=vmem, size = 0x800, scoped, tag = 'output window, operand 0, single buffered']
    %7 = vsyncpa [#allocation3], 0
    %8 = vsyncpa [#allocation6], 0
    %9 = vsyncpa [#allocation4], 0
    // Predicated region
    $region2: #{tpu_custom_call.1} parent=1 // pred_check
      _
    $region3: #{tpu_custom_call.1} parent=1 // pred_check_branch
      %11 = sbr.rel (0) target = $region5
    $region4: #{tpu_custom_call.1} parent=1 // pred_region
      %s13 = ssub.s32 64, 64
      %14 = vsyncadd [#allocation3], %s13
      %s16 = sshll.u32 [#allocation2], 4
      %s17 = int_to_ptr.vmem [resolvable:$true] %s16
      %19 = dma.hbm_to_vmem [thread:$0]  %s0, 64, %s17, [#allocation3]
    $region5: #{tpu_custom_call.1} parent=1 // pred_fallthru
      _
    // Predicated region
    $region6: #{tpu_custom_call.1} parent=1 // pred_check
      _
    $region7: #{tpu_custom_call.1} parent=1 // pred_check_branch
      %21 = sbr.rel (0) target = $region9
    $region8: #{tpu_custom_call.1} parent=1 // pred_region
      %s23 = ssub.s32 32, 32
      %24 = vsyncadd [#allocation6], %s23
      %s26 = sshll.u32 [#allocation5], 4
      %s27 = int_to_ptr.vmem [resolvable:$true] %s26
      %29 = dma.hbm_to_vmem [thread:$0]  %s1, 32, %s27, [#allocation6]
    $region9: #{tpu_custom_call.1} parent=1 // pred_fallthru
      _
    // Predicated region
    $region10: #{tpu_custom_call.1} parent=1 // pred_check
      _
    $region11: #{tpu_custom_call.1} parent=1 // pred_check_branch
      %31 = sbr.rel (0) target = $region13
    $region12: #{tpu_custom_call.1} parent=1 // pred_region
      %32 = dma.done [#allocation3], 64
    $region13: #{tpu_custom_call.1} parent=1 // pred_fallthru
      _
    // Predicated region
    $region14: #{tpu_custom_call.1} parent=1 // pred_check
      _
    $region15: #{tpu_custom_call.1} parent=1 // pred_check_branch
      %34 = sbr.rel (0) target = $region17
    $region16: #{tpu_custom_call.1} parent=1 // pred_region
      %35 = dma.done [#allocation6], 32
    $region17: #{tpu_custom_call.1} parent=1 // pred_fallthru
      _
    %v36 = vld [vmem:[#allocation2] sm:$0xf]
    %v37 = vld [vmem:[#allocation5] sm:$0x3]
    %v39 = vlaneseq
    %v40 = vshrl.u32 %v39, 7
    %v41 = vsub.s32 0, %v40
    %v42 = vrot.slane %v37, %v41
    %v43 = vlaneseq
    %v44 = vshrl.u32 %v43, 7
    %v45 = vsub.s32 1, %v44
    %v46 = vrot.slane %v37, %v45
    %v47 = vcombine.low %v42, %v46
    %v49 = vunpack.c.l.s4 1983009808
    %v50 = vunpack.c.0.s8 %v49
    %v51 = vlaneseq
    %v52 = vshrl.u32 %v51, 7
    %v53 = vsub.s32 %v50, %v52
    %v54 = vrot.slane %v47, %v53
    %v56 = vadd.f32 %v36, %v54
    %57 = vst [vmem:[#allocation7] sm:$0xf] %v56
    // Predicated region
    $region18: #{tpu_custom_call.1} parent=1 // pred_check
      _
    $region19: #{tpu_custom_call.1} parent=1 // pred_check_branch
      %59 = sbr.rel (0) target = $region21
    $region20: #{tpu_custom_call.1} parent=1 // pred_region
      %s61 = ssub.s32 64, 64
      %62 = vsyncadd [#allocation4], %s61
      %s64 = sshll.u32 [#allocation7], 4
      %s65 = int_to_ptr.vmem [resolvable:$true] %s64
      %67 = dma.vmem_to_hbm [thread:$0]  %s65, 64, %s2, [#allocation4]
    $region21: #{tpu_custom_call.1} parent=1 // pred_fallthru
      _
    // Predicated region
    $region22: #{tpu_custom_call.1} parent=1 // pred_check
      _
    $region23: #{tpu_custom_call.1} parent=1 // pred_check_branch
      %69 = sbr.rel (0) target = $region25
    $region24: #{tpu_custom_call.1} parent=1 // pred_region
      %70 = dma.done [#allocation4], 64
    $region25: #{tpu_custom_call.1} parent=1 // pred_fallthru
      _
    %71 = vsyncpa [#allocation3], 1
    %72 = vsyncpa [#allocation6], 1
    %73 = vsyncpa [#allocation4], 1

</llo_original>
